<compile_context>
chip_gen: v7x
topology: tpu7x:2x2x1
jax: 0.10.0
libtpu: 0.0.40
codegen_flags: <defaults>
</compile_context>

<pallas_src>
import math

import jax
import jax.numpy as jnp
from jax.experimental import pallas as pl
from jax.experimental.pallas import tpu as pltpu


# ------------------------------ small helpers ------------------------------ #
def _round_up(n, m):
    return ((n + m - 1) // m) * m


def _pad_2d(a, rows, cols):
    return jnp.pad(a, ((0, rows - a.shape[0]), (0, cols - a.shape[1])))


# ------------------------------ Pallas kernel ------------------------------ #
def sarsa_mlp_kernel(x_ref, w1_ref, b1_ref, w2_ref, b2_ref, w3_ref, b3_ref,
                     o_ref):
    """Fused 3-layer MLP: tanh(xW1+b1) -> tanh(.W2+b2) -> .W3+b3.

    Matmuls run on the MXU with bf16 operands and f32 accumulation; the
    elementwise chain (bias add, tanh) stays f32 (EUP tanh, safe on v5e).
    """
    x = x_ref[...]                                             # (TB, D) bf16
    h1 = jnp.tanh(
        jnp.dot(x, w1_ref[...], preferred_element_type=jnp.float32)
        + b1_ref[...])                                         # (TB, H1p) f32
    h1 = h1.astype(w2_ref.dtype)
    h2 = jnp.tanh(
        jnp.dot(h1, w2_ref[...], preferred_element_type=jnp.float32)
        + b2_ref[...])                                         # (TB, H2p) f32
    h2 = h2.astype(w3_ref.dtype)
    q = (jnp.dot(h2, w3_ref[...], preferred_element_type=jnp.float32)
         + b3_ref[...])                                        # (TB, Ap) f32
    o_ref[...] = q.astype(o_ref.dtype)


# ------------------------------ wrapper ------------------------------------ #
def prepare_kernel_params(params, compute_dtype=jnp.bfloat16):
    """Zero-pad layer widths to multiples of 128 and cast weights to bf16."""
    (w1, b1), (w2, b2), (w3, b3) = params
    D, H1 = w1.shape
    H2 = w2.shape[1]
    A = w3.shape[1]
    H1p = _round_up(H1, 128)
    H2p = _round_up(H2, 128)
    Ap = _round_up(A, 128)

    w1p = _pad_2d(w1, D, H1p).astype(compute_dtype)
    b1p = _pad_2d(b1, 1, H1p).astype(jnp.float32)
    w2p = _pad_2d(w2, H1p, H2p).astype(compute_dtype)
    b2p = _pad_2d(b2, 1, H2p).astype(jnp.float32)
    w3p = _pad_2d(w3, H2p, Ap).astype(compute_dtype)
    b3p = _pad_2d(b3, 1, Ap).astype(jnp.float32)
    return (w1p, b1p, w2p, b2p, w3p, b3p), Ap


def sarsa_forward(x, params, *, tile_b=512, compute_dtype=jnp.bfloat16):
    """Run the fused MLP kernel.  x: (B, D) float32. Returns (B, num_actions)."""
    B, D = x.shape
    A = params[-1][0].shape[1]

    kparams, Ap = prepare_kernel_params(params, compute_dtype)
    w1p, b1p, w2p, b2p, w3p, b3p = kparams

    # Batch tiling: TB multiple of 8 (sublane), batch padded to multiple of TB.
    TB = min(tile_b, _round_up(B, 8))
    Bp = _round_up(B, TB)
    xp = x if Bp == B else jnp.pad(x, ((0, Bp - B), (0, 0)))
    xp = xp.astype(compute_dtype)

    grid = (Bp // TB,)
    const = lambda i: (0, 0)          # weights/biases resident across the grid

    out = pl.pallas_call(
        sarsa_mlp_kernel,
        out_shape=jax.ShapeDtypeStruct((Bp, Ap), jnp.float32),
        grid=grid,
        in_specs=[
            pl.BlockSpec((TB, D), lambda i: (i, 0)),      # x, tiled over batch
            pl.BlockSpec(w1p.shape, const),
            pl.BlockSpec(b1p.shape, const),
            pl.BlockSpec(w2p.shape, const),
            pl.BlockSpec(b2p.shape, const),
            pl.BlockSpec(w3p.shape, const),
            pl.BlockSpec(b3p.shape, const),
        ],
        out_specs=pl.BlockSpec((TB, Ap), lambda i: (i, 0)),  # lane-dense store
        compiler_params=pltpu.CompilerParams(
            dimension_semantics=("parallel",),               # 2x on v7x megacore
            vmem_limit_bytes=32 * 1024 * 1024,               # safe on v5e/v6e/v7x
        ),
    )(xp, w1p, b1p, w2p, b2p, w3p, b3p)

    return out[:B, :A]


# --------------------------- parameter helpers ------------------------------ #
def xavier_uniform(key, fan_in, fan_out):
    bound = math.sqrt(6.0 / (fan_in + fan_out))
    return jax.random.uniform(key, (fan_in, fan_out), jnp.float32,
                              minval=-bound, maxval=bound)


def linear_bias(key, fan_in, fan_out):
    # PyTorch nn.Linear default bias init: U(-1/sqrt(fan_in), 1/sqrt(fan_in)).
    bound = 1.0 / math.sqrt(fan_in)
    return jax.random.uniform(key, (1, fan_out), jnp.float32,
                              minval=-bound, maxval=bound)


def init_sarsa_params(key, layer_dims, num_actions):
    dims = list(layer_dims) + [num_actions]
    params = []
    for i in range(len(dims) - 1):
        key, kw, kb = jax.random.split(key, 3)
        w = xavier_uniform(kw, dims[i], dims[i + 1])
        b = linear_bias(kb, dims[i], dims[i + 1])
        params.append((w, b))
    return params


def reference_forward(x, params):
    (w1, b1), (w2, b2), (w3, b3) = params
    h = jnp.tanh(x @ w1 + b1)
    h = jnp.tanh(h @ w2 + b2)
    return h @ w3 + b3


# --------------------------------- main ------------------------------------- #
if __name__ == "__main__":
    # SarsaNet(num_actions=8, state_shape=[[4, 16]], mlp_layers=[64, 32])
    #  -> layer_dims = [64, 64, 32], final Linear to 8 actions.
    state_shape = (4, 16)           # prod = 64 input features
    mlp_layers = [64, 32]
    num_actions = 8

    in_dim = state_shape[0] * state_shape[1]
    layer_dims = [in_dim] + mlp_layers

    key = jax.random.PRNGKey(0)
    key, kx_small, kx_big = jax.random.split(key, 3)
    params = init_sarsa_params(key, layer_dims, num_actions)

    # Small-shape check (batch=2): raw states (2, 4, 16) -> flattened (2, 64).
    states = jax.random.normal(kx_small, (2,) + state_shape, jnp.float32)
    x_small = states.reshape(2, -1)
    q_small = jax.block_until_ready(sarsa_forward(x_small, params))
    q_small_ref = reference_forward(x_small, params)
    assert q_small.shape == (2, num_actions)
    assert jnp.allclose(q_small, q_small_ref, atol=3e-2, rtol=3e-2), \
        "small-batch mismatch vs reference"

    # Larger, non-multiple-of-tile batch exercises the pipelined batch grid,
    # the resident-weight specs and the batch/lane padding paths.
    x_big = jax.random.normal(kx_big, (1000, in_dim), jnp.float32)
    q_big = jax.block_until_ready(sarsa_forward(x_big, params, tile_b=512))
    q_big_ref = reference_forward(x_big, params)
    assert q_big.shape == (1000, num_actions)
    assert jnp.allclose(q_big, q_big_ref, atol=3e-2, rtol=3e-2), \
        "large-batch mismatch vs reference"

    print("KERNEL_OK")
</pallas_src>

<mosaic_0001>
module attributes {stable_mosaic.version = 11 : i64} {
  func.func @sarsa_mlp_kernel(%arg0: i32, %arg1: memref<8x64xbf16, #tpu.memory_space<vmem>>, %arg2: memref<64x128xbf16, #tpu.memory_space<vmem>>, %arg3: memref<1x128xf32, #tpu.memory_space<vmem>>, %arg4: memref<128x128xbf16, #tpu.memory_space<vmem>>, %arg5: memref<1x128xf32, #tpu.memory_space<vmem>>, %arg6: memref<128x128xbf16, #tpu.memory_space<vmem>>, %arg7: memref<1x128xf32, #tpu.memory_space<vmem>>, %arg8: memref<8x128xf32, #tpu.memory_space<vmem>>) attributes {dimension_semantics = [#tpu.dimension_semantics<parallel>], iteration_bounds = array<i64: 1>, scalar_prefetch = 0 : i64, scratch_operands = 0 : i64, tpu.core_type = #tpu.core_type<tc>, window_params = [{transform_indices = @transform_0, window_bounds = array<i64: 8, 64>}, {pipeline_mode = #tpu.pipeline_mode<synchronous>, transform_indices = @transform_1, window_bounds = array<i64: 64, 128>}, {pipeline_mode = #tpu.pipeline_mode<synchronous>, transform_indices = @transform_2, window_bounds = array<i64: 1, 128>}, {pipeline_mode = #tpu.pipeline_mode<synchronous>, transform_indices = @transform_3, window_bounds = array<i64: 128, 128>}, {pipeline_mode = #tpu.pipeline_mode<synchronous>, transform_indices = @transform_4, window_bounds = array<i64: 1, 128>}, {pipeline_mode = #tpu.pipeline_mode<synchronous>, transform_indices = @transform_5, window_bounds = array<i64: 128, 128>}, {pipeline_mode = #tpu.pipeline_mode<synchronous>, transform_indices = @transform_6, window_bounds = array<i64: 1, 128>}, {transform_indices = @transform_7, window_bounds = array<i64: 8, 128>}]} {
    %c0 = arith.constant 0 : index
    %c0_0 = arith.constant 0 : index
    %0 = vector.load %arg1[%c0, %c0_0] : memref<8x64xbf16, #tpu.memory_space<vmem>>, vector<8x64xbf16>
    %c0_1 = arith.constant 0 : index
    %c0_2 = arith.constant 0 : index
    %1 = vector.load %arg2[%c0_1, %c0_2] : memref<64x128xbf16, #tpu.memory_space<vmem>>, vector<64x128xbf16>
    %cst = arith.constant dense<0.000000e+00> : vector<8x128xf32>
    %2 = tpu.matmul %0, %1, %cst {dimension_numbers = #tpu.dot_dimension_numbers<[1], [0], [0], [1], [0, 0, 1, 1], [], []>} : vector<8x64xbf16>, vector<64x128xbf16>, vector<8x128xf32> -> vector<8x128xf32>
    %c0_3 = arith.constant 0 : index
    %c0_4 = arith.constant 0 : index
    %3 = vector.load %arg3[%c0_3, %c0_4] : memref<1x128xf32, #tpu.memory_space<vmem>>, vector<1x128xf32>
    %4 = vector.broadcast %3 : vector<1x128xf32> to vector<8x128xf32>
    %5 = arith.addf %2, %4 : vector<8x128xf32>
    %6 = math.tanh %5 : vector<8x128xf32>
    %7 = arith.truncf %6 : vector<8x128xf32> to vector<8x128xbf16>
    %c0_5 = arith.constant 0 : index
    %c0_6 = arith.constant 0 : index
    %8 = vector.load %arg4[%c0_5, %c0_6] : memref<128x128xbf16, #tpu.memory_space<vmem>>, vector<128x128xbf16>
    %cst_7 = arith.constant dense<0.000000e+00> : vector<8x128xf32>
    %9 = tpu.matmul %7, %8, %cst_7 {dimension_numbers = #tpu.dot_dimension_numbers<[1], [0], [0], [1], [0, 0, 1, 1], [], []>} : vector<8x128xbf16>, vector<128x128xbf16>, vector<8x128xf32> -> vector<8x128xf32>
    %c0_8 = arith.constant 0 : index
    %c0_9 = arith.constant 0 : index
    %10 = vector.load %arg5[%c0_8, %c0_9] : memref<1x128xf32, #tpu.memory_space<vmem>>, vector<1x128xf32>
    %11 = vector.broadcast %10 : vector<1x128xf32> to vector<8x128xf32>
    %12 = arith.addf %9, %11 : vector<8x128xf32>
    %13 = math.tanh %12 : vector<8x128xf32>
    %14 = arith.truncf %13 : vector<8x128xf32> to vector<8x128xbf16>
    %c0_10 = arith.constant 0 : index
    %c0_11 = arith.constant 0 : index
    %15 = vector.load %arg6[%c0_10, %c0_11] : memref<128x128xbf16, #tpu.memory_space<vmem>>, vector<128x128xbf16>
    %cst_12 = arith.constant dense<0.000000e+00> : vector<8x128xf32>
    %16 = tpu.matmul %14, %15, %cst_12 {dimension_numbers = #tpu.dot_dimension_numbers<[1], [0], [0], [1], [0, 0, 1, 1], [], []>} : vector<8x128xbf16>, vector<128x128xbf16>, vector<8x128xf32> -> vector<8x128xf32>
    %c0_13 = arith.constant 0 : index
    %c0_14 = arith.constant 0 : index
    %17 = vector.load %arg7[%c0_13, %c0_14] : memref<1x128xf32, #tpu.memory_space<vmem>>, vector<1x128xf32>
    %18 = vector.broadcast %17 : vector<1x128xf32> to vector<8x128xf32>
    %19 = arith.addf %16, %18 : vector<8x128xf32>
    %c0_15 = arith.constant 0 : index
    %c0_16 = arith.constant 0 : index
    %20 = vector.load %arg8[%c0_15, %c0_16] : memref<8x128xf32, #tpu.memory_space<vmem>>, vector<8x128xf32>
    tpu.vector_store %arg8[%c0_15, %c0_16], %19 {strides = array<i32>} : memref<8x128xf32, #tpu.memory_space<vmem>>, vector<8x128xf32>,
    return
  }
  func.func @transform_0(%arg0: i32) -> (i32, i32) {
    %c0_i32 = arith.constant 0 : i32
    %c0_i32_0 = arith.constant 0 : i32
    return %arg0, %c0_i32 : i32, i32
  }
  func.func @transform_1(%arg0: i32) -> (i32, i32) {
    %c0_i32 = arith.constant 0 : i32
    %c0_i32_0 = arith.constant 0 : i32
    %c0_i32_1 = arith.constant 0 : i32
    return %c0_i32, %c0_i32_0 : i32, i32
  }
  func.func @transform_2(%arg0: i32) -> (i32, i32) {
    %c0_i32 = arith.constant 0 : i32
    %c0_i32_0 = arith.constant 0 : i32
    %c0_i32_1 = arith.constant 0 : i32
    return %c0_i32, %c0_i32_0 : i32, i32
  }
  func.func @transform_3(%arg0: i32) -> (i32, i32) {
    %c0_i32 = arith.constant 0 : i32
    %c0_i32_0 = arith.constant 0 : i32
    %c0_i32_1 = arith.constant 0 : i32
    return %c0_i32, %c0_i32_0 : i32, i32
  }
  func.func @transform_4(%arg0: i32) -> (i32, i32) {
    %c0_i32 = arith.constant 0 : i32
    %c0_i32_0 = arith.constant 0 : i32
    %c0_i32_1 = arith.constant 0 : i32
    return %c0_i32, %c0_i32_0 : i32, i32
  }
  func.func @transform_5(%arg0: i32) -> (i32, i32) {
    %c0_i32 = arith.constant 0 : i32
    %c0_i32_0 = arith.constant 0 : i32
    %c0_i32_1 = arith.constant 0 : i32
    return %c0_i32, %c0_i32_0 : i32, i32
  }
  func.func @transform_6(%arg0: i32) -> (i32, i32) {
    %c0_i32 = arith.constant 0 : i32
    %c0_i32_0 = arith.constant 0 : i32
    %c0_i32_1 = arith.constant 0 : i32
    return %c0_i32, %c0_i32_0 : i32, i32
  }
  func.func @transform_7(%arg0: i32) -> (i32, i32) {
    %c0_i32 = arith.constant 0 : i32
    %c0_i32_0 = arith.constant 0 : i32
    return %arg0, %c0_i32 : i32, i32
  }
}

</mosaic_0001>

<llo_original>
// kernel: tpu_custom_call.1
$region0: #{tpu_custom_call.1}
  #allocation0 [shape = 'u32[]', space=smem, size = 0x4, offset = 0x4, fixed_abs, tag = 'smem constant byte address 0x4 - core index']
  #allocation1 [shape = 'u32[144,128]{1,0:T(1,128)}', space=vmem, size = 0x12000, scoped, tag = 'internal scratch']
  %s0 = inlined_call_operand.hbm [shape: bf16[8,64], index: 0, kind: input, shape index: {}]
  %s1 = inlined_call_operand.hbm [shape: bf16[64,128], index: 1, kind: input, shape index: {}]
  %s2 = inlined_call_operand.vmem [shape: f32[1,128], index: 2, kind: input, shape index: {}]
  %s3 = inlined_call_operand.hbm [shape: bf16[128,128], index: 3, kind: input, shape index: {}]
  %s4 = inlined_call_operand.vmem [shape: f32[1,128], index: 4, kind: input, shape index: {}]
  %s5 = inlined_call_operand.hbm [shape: bf16[128,128], index: 5, kind: input, shape index: {}]
  %s6 = inlined_call_operand.vmem [shape: f32[1,128], index: 6, kind: input, shape index: {}]
  %s7 = inlined_call_operand.hbm [shape: f32[8,128], index: 7, kind: output, shape index: {}]
  %s8 = sld [smem:[#allocation0]]
  $region54: #{tpu_custom_call.1} parent=0
    _
  %s10 = ssub.s32 1, %s8
  %s11 = scalar_select 0, %s10, %s8
  $region1: #{tpu_custom_call.1} parent=0
    #allocation2 [shape = 'u8[2048]{0}', space=vmem, size = 0x800, scoped, tag = 'input window, operand 0, single buffered']
    #allocation3 [shape = 's32[1]{0}', space=sflag, size = 0x4, scoped, tag = 'scoped memory for tpu_custom_call.1']
    #allocation4 [shape = 's32[1]{0}', space=sflag, size = 0x4, scoped, tag = 'scoped memory for tpu_custom_call.1']
    #allocation5 [shape = 'u8[16384]{0}', space=vmem, size = 0x4000, scoped, tag = 'input window, operand 1, single buffered']
    #allocation6 [shape = 's32[1]{0}', space=sflag, size = 0x4, scoped, tag = 'scoped memory for tpu_custom_call.1']
    #allocation7 [shape = 'u8[32768]{0}', space=vmem, size = 0x8000, scoped, tag = 'input window, operand 3, single buffered']
    #allocation8 [shape = 'u8[32768]{0}', space=vmem, size = 0x8000, scoped, tag = 'input window, operand 5, single buffered']
    #allocation9 [shape = 's32[1]{0}', space=sflag, size = 0x4, scoped, tag = 'scoped memory for tpu_custom_call.1']
    #allocation10 [shape = 'u8[4096]{0}', space=vmem, size = 0x1000, scoped, tag = 'output window, operand 0, single buffered']
    %12 = vsyncpa [#allocation3], 0
    %13 = vsyncpa [#allocation6], 0
    %14 = vsyncpa [#allocation9], 0
    %15 = vsyncpa [#allocation4], 0
    // Predicated region
    $region2: #{tpu_custom_call.1} parent=1 // pred_check
      _
    $region3: #{tpu_custom_call.1} parent=1 // pred_check_branch
      %17 = sbr.rel (0) target = $region5
    $region4: #{tpu_custom_call.1} parent=1 // pred_region
      %s19 = ssub.s32 64, 64
      %20 = vsyncadd [#allocation3], %s19
      %s22 = sshll.u32 [#allocation2], 4
      %s23 = int_to_ptr.vmem [resolvable:$true] %s22
      %25 = dma.hbm_to_vmem [thread:$0]  %s0, 64, %s23, [#allocation3]
    $region5: #{tpu_custom_call.1} parent=1 // pred_fallthru
      _
    // Predicated region
    $region6: #{tpu_custom_call.1} parent=1 // pred_check
      _
    $region7: #{tpu_custom_call.1} parent=1 // pred_check_branch
      %27 = sbr.rel (0) target = $region9
    $region8: #{tpu_custom_call.1} parent=1 // pred_region
      %s29 = ssub.s32 512, 512
      %30 = vsyncadd [#allocation6], %s29
      %s31 = sshll.u32 [#allocation5], 4
      %s32 = int_to_ptr.vmem [resolvable:$true] %s31
      %37 = dma.hbm_to_vmem [thread:$0]  %s1, 512, %s32, [#allocation6], 64, 64, 4
    $region9: #{tpu_custom_call.1} parent=1 // pred_fallthru
      _
    // Predicated region
    $region10: #{tpu_custom_call.1} parent=1 // pred_check
      _
    $region11: #{tpu_custom_call.1} parent=1 // pred_check_branch
      %39 = sbr.rel (0) target = $region13
    $region12: #{tpu_custom_call.1} parent=1 // pred_region
      _
    $region13: #{tpu_custom_call.1} parent=1 // pred_fallthru
      _
    // Predicated region
    $region14: #{tpu_custom_call.1} parent=1 // pred_check
      _
    $region15: #{tpu_custom_call.1} parent=1 // pred_check_branch
      %41 = sbr.rel (0) target = $region17
    $region16: #{tpu_custom_call.1} parent=1 // pred_region
      %s43 = ssub.s32 1024, 1024
      %44 = vsyncadd [#allocation6], %s43
      %s45 = sshll.u32 [#allocation7], 4
      %s46 = int_to_ptr.vmem [resolvable:$true] %s45
      %51 = dma.hbm_to_vmem [thread:$0]  %s3, 1024, %s46, [#allocation6], 64, 64, 4
    $region17: #{tpu_custom_call.1} parent=1 // pred_fallthru
      _
    // Predicated region
    $region18: #{tpu_custom_call.1} parent=1 // pred_check
      _
    $region19: #{tpu_custom_call.1} parent=1 // pred_check_branch
      %53 = sbr.rel (0) target = $region21
    $region20: #{tpu_custom_call.1} parent=1 // pred_region
      _
    $region21: #{tpu_custom_call.1} parent=1 // pred_fallthru
      _
    // Predicated region
    $region22: #{tpu_custom_call.1} parent=1 // pred_check
      _
    $region23: #{tpu_custom_call.1} parent=1 // pred_check_branch
      %55 = sbr.rel (0) target = $region25
    $region24: #{tpu_custom_call.1} parent=1 // pred_region
      %s57 = ssub.s32 1024, 1024
      %58 = vsyncadd [#allocation9], %s57
      %s59 = sshll.u32 [#allocation8], 4
      %s60 = int_to_ptr.vmem [resolvable:$true] %s59
      %65 = dma.hbm_to_vmem [thread:$0]  %s5, 1024, %s60, [#allocation9], 64, 64, 4
    $region25: #{tpu_custom_call.1} parent=1 // pred_fallthru
      _
    // Predicated region
    $region26: #{tpu_custom_call.1} parent=1 // pred_check
      _
    $region27: #{tpu_custom_call.1} parent=1 // pred_check_branch
      %67 = sbr.rel (0) target = $region29
    $region28: #{tpu_custom_call.1} parent=1 // pred_region
      _
    $region29: #{tpu_custom_call.1} parent=1 // pred_fallthru
      _
    // Predicated region
    $region30: #{tpu_custom_call.1} parent=1 // pred_check
      _
    $region31: #{tpu_custom_call.1} parent=1 // pred_check_branch
      %69 = sbr.rel (0) target = $region33
    $region32: #{tpu_custom_call.1} parent=1 // pred_region
      %70 = dma.done [#allocation3], 64
    $region33: #{tpu_custom_call.1} parent=1 // pred_fallthru
      _
    // Predicated region
    $region34: #{tpu_custom_call.1} parent=1 // pred_check
      _
    $region35: #{tpu_custom_call.1} parent=1 // pred_check_branch
      %72 = sbr.rel (0) target = $region37
    $region36: #{tpu_custom_call.1} parent=1 // pred_region
      %73 = dma.done [#allocation6], 512
    $region37: #{tpu_custom_call.1} parent=1 // pred_fallthru
      _
    // Predicated region
    $region38: #{tpu_custom_call.1} parent=1 // pred_check
      _
    $region39: #{tpu_custom_call.1} parent=1 // pred_check_branch
      %75 = sbr.rel (0) target = $region41
    $region40: #{tpu_custom_call.1} parent=1 // pred_region
      %76 = dma.done [#allocation6], 1024
    $region41: #{tpu_custom_call.1} parent=1 // pred_fallthru
      _
    // Predicated region
    $region42: #{tpu_custom_call.1} parent=1 // pred_check
      _
    $region43: #{tpu_custom_call.1} parent=1 // pred_check_branch
      %78 = sbr.rel (0) target = $region45
    $region44: #{tpu_custom_call.1} parent=1 // pred_region
      %79 = dma.done [#allocation9], 1024
    $region45: #{tpu_custom_call.1} parent=1 // pred_fallthru
      _
    %v81 = vld [vmem:[#allocation2] sm:$0xf]
    %v82 = vld [vmem:[#allocation5] sm:$0xf]
    %v83 = vld [vmem:[#allocation5 + $0x4] sm:$0xf]
    %v84 = vld [vmem:[#allocation5 + $0x8] sm:$0xf]
    %v85 = vld [vmem:[#allocation5 + $0xc] sm:$0xf]
    %v86 = vld [vmem:[#allocation5 + $0x10] sm:$0xf]
    %v87 = vld [vmem:[#allocation5 + $0x14] sm:$0xf]
    %v88 = vld [vmem:[#allocation5 + $0x18] sm:$0xf]
    %v89 = vld [vmem:[#allocation5 + $0x1c] sm:$0xf]
    %v90 = vld [vmem:[%s2] sm:$0x1]
    %v92 = vlaneseq
    %v93 = vshrl.u32 %v92, 7
    %v94 = vsub.s32 0, %v93
    %v95 = vrot.slane %v90, %v94
    %v105 = vunpack.c.l.b16 %v82
    %v106 = vunpack.c.l.b16 %v83
    %v107 = vunpack.c.l.b16 %v84
    %v108 = vunpack.c.l.b16 %v85
    %v109 = vunpack.c.l.b16 %v86
    %v110 = vunpack.c.l.b16 %v87
    %v111 = vunpack.c.l.b16 %v88
    %v112 = vunpack.c.l.b16 %v89
    %v113 = vpack.c.b16 %v106, %v105
    %v114 = vpack.c.b16 %v108, %v107
    %v115 = vpack.c.b16 %v110, %v109
    %v116 = vpack.c.b16 %v112, %v111
    %vm121 = vcmask 523264
    %v123 = vsel %vm121, %v81, 0
    %125 = vmatprep.subr.bf16.mxu0 0
    %126 = vmatpush1.bf16.msra.mxu0 %v113
    %127 = vmatprep.subr.bf16.mxu0 0
    %128 = vmatpush1.bf16.msra.mxu0 %v114
    %129 = vmatprep.subr.bf16.mxu0 0
    %130 = vmatpush1.bf16.msra.mxu0 %v115
    %131 = vmatprep.subr.bf16.mxu0 0
    %132 = vmatpush1.bf16.msra.mxu0 %v116
    %133 = vmatprep.subr.bf16.mxu0 0
    %134 = vmatpush1.bf16.msra.mxu0 0
    %135 = vmatprep.subr.bf16.mxu0 0
    %136 = vmatpush1.bf16.msra.mxu0 0
    %137 = vmatprep.subr.bf16.mxu0 0
    %138 = vmatpush1.bf16.msra.mxu0 0
    %139 = vmatprep.subr.bf16.mxu0 0
    %140 = vmatpush1.bf16.msra.mxu0 0
    %141 = vmatprep.subr.bf16.mxu0 0
    %142 = vmatpush1.bf16.msra.mxu0 0
    %143 = vmatprep.subr.bf16.mxu0 0
    %144 = vmatpush1.bf16.msra.mxu0 0
    %145 = vmatprep.subr.bf16.mxu0 0
    %146 = vmatpush1.bf16.msra.mxu0 0
    %147 = vmatprep.subr.bf16.mxu0 0
    %148 = vmatpush1.bf16.msra.mxu0 0
    %149 = vmatprep.subr.bf16.mxu0 0
    %150 = vmatpush1.bf16.msra.mxu0 0
    %151 = vmatprep.subr.bf16.mxu0 0
    %152 = vmatpush1.bf16.msra.mxu0 0
    %153 = vmatprep.subr.bf16.mxu0 0
    %154 = vmatpush1.bf16.msra.mxu0 0
    %155 = vmatprep.subr.bf16.mxu0 0
    %156 = vmatpush1.bf16.msra.mxu0 0
    %157 = vmatprep.mubr.bf16.mxu0 0
    %158 = vmatmul.mubr.bf16.gmra.mrb[0].mxu0 %v123
    %v159 = vpop.f32.mrb[0].mxu0
    %v160 = vadd.f32 %v95, %v159
    %v161 = vpop.f32.mrb[0].mxu0
    %v162 = vpop.f32.mrb[0].mxu0
    %v163 = vpop.f32.mrb[0].mxu0
    %164 = vdwg.mxu0
    %v165 = vtanh.pop %v160
    %v166 = vpack.c.bf16 %v165, %v165
    %v167 = vld [vmem:[#allocation7] sm:$0xf]
    %v168 = vld [vmem:[#allocation7 + $0x4] sm:$0xf]
    %v169 = vld [vmem:[#allocation7 + $0x8] sm:$0xf]
    %v170 = vld [vmem:[#allocation7 + $0xc] sm:$0xf]
    %v171 = vld [vmem:[#allocation7 + $0x10] sm:$0xf]
    %v172 = vld [vmem:[#allocation7 + $0x14] sm:$0xf]
    %v173 = vld [vmem:[#allocation7 + $0x18] sm:$0xf]
    %v174 = vld [vmem:[#allocation7 + $0x1c] sm:$0xf]
    %v175 = vld [vmem:[#allocation7 + $0x20] sm:$0xf]
    %v176 = vld [vmem:[#allocation7 + $0x24] sm:$0xf]
    %v177 = vld [vmem:[#allocation7 + $0x28] sm:$0xf]
    %v178 = vld [vmem:[#allocation7 + $0x2c] sm:$0xf]
    %v179 = vld [vmem:[#allocation7 + $0x30] sm:$0xf]
    %v180 = vld [vmem:[#allocation7 + $0x34] sm:$0xf]
    %v181 = vld [vmem:[#allocation7 + $0x38] sm:$0xf]
    %v182 = vld [vmem:[#allocation7 + $0x3c] sm:$0xf]
    %v183 = vld [vmem:[%s4] sm:$0x1]
    %v185 = vlaneseq
    %v186 = vshrl.u32 %v185, 7
    %v187 = vsub.s32 0, %v186
    %v188 = vrot.slane %v183, %v187
    %v206 = vunpack.c.l.b16 %v167
    %v207 = vunpack.c.l.b16 %v168
    %v208 = vunpack.c.l.b16 %v169
    %v209 = vunpack.c.l.b16 %v170
    %v210 = vunpack.c.l.b16 %v171
    %v211 = vunpack.c.l.b16 %v172
    %v212 = vunpack.c.l.b16 %v173
    %v213 = vunpack.c.l.b16 %v174
    %v214 = vunpack.c.l.b16 %v175
    %v215 = vunpack.c.l.b16 %v176
    %v216 = vunpack.c.l.b16 %v177
    %v217 = vunpack.c.l.b16 %v178
    %v218 = vunpack.c.l.b16 %v179
    %v219 = vunpack.c.l.b16 %v180
    %v220 = vunpack.c.l.b16 %v181
    %v221 = vunpack.c.l.b16 %v182
    %v222 = vpack.c.b16 %v207, %v206
    %v223 = vpack.c.b16 %v209, %v208
    %v224 = vpack.c.b16 %v211, %v210
    %v225 = vpack.c.b16 %v213, %v212
    %v226 = vpack.c.b16 %v215, %v214
    %v227 = vpack.c.b16 %v217, %v216
    %v228 = vpack.c.b16 %v219, %v218
    %v229 = vpack.c.b16 %v221, %v220
    %238 = vmatprep.subr.bf16.mxu0 0
    %239 = vmatpush1.bf16.msra.mxu0 %v222
    %240 = vmatprep.subr.bf16.mxu0 0
    %241 = vmatpush1.bf16.msra.mxu0 %v223
    %242 = vmatprep.subr.bf16.mxu0 0
    %243 = vmatpush1.bf16.msra.mxu0 %v224
    %244 = vmatprep.subr.bf16.mxu0 0
    %245 = vmatpush1.bf16.msra.mxu0 %v225
    %246 = vmatprep.subr.bf16.mxu0 0
    %247 = vmatpush1.bf16.msra.mxu0 %v226
    %248 = vmatprep.subr.bf16.mxu0 0
    %249 = vmatpush1.bf16.msra.mxu0 %v227
    %250 = vmatprep.subr.bf16.mxu0 0
    %251 = vmatpush1.bf16.msra.mxu0 %v228
    %252 = vmatprep.subr.bf16.mxu0 0
    %253 = vmatpush1.bf16.msra.mxu0 %v229
    %254 = vmatprep.subr.bf16.mxu0 0
    %255 = vmatpush1.bf16.msra.mxu0 0
    %256 = vmatprep.subr.bf16.mxu0 0
    %257 = vmatpush1.bf16.msra.mxu0 0
    %258 = vmatprep.subr.bf16.mxu0 0
    %259 = vmatpush1.bf16.msra.mxu0 0
    %260 = vmatprep.subr.bf16.mxu0 0
    %261 = vmatpush1.bf16.msra.mxu0 0
    %262 = vmatprep.subr.bf16.mxu0 0
    %263 = vmatpush1.bf16.msra.mxu0 0
    %264 = vmatprep.subr.bf16.mxu0 0
    %265 = vmatpush1.bf16.msra.mxu0 0
    %266 = vmatprep.subr.bf16.mxu0 0
    %267 = vmatpush1.bf16.msra.mxu0 0
    %268 = vmatprep.subr.bf16.mxu0 0
    %269 = vmatpush1.bf16.msra.mxu0 0
    %270 = vmatprep.mubr.bf16.mxu0 0
    %271 = vmatmul.mubr.bf16.gmra.mrb[0].mxu0 %v166
    %v272 = vpop.f32.mrb[0].mxu0
    %v273 = vadd.f32 %v188, %v272
    %v274 = vpop.f32.mrb[0].mxu0
    %v275 = vpop.f32.mrb[0].mxu0
    %v276 = vpop.f32.mrb[0].mxu0
    %277 = vdwg.mxu0
    %v278 = vtanh.pop %v273
    %v279 = vpack.c.bf16 %v278, %v278
    %v280 = vld [vmem:[#allocation8] sm:$0xf]
    %v281 = vld [vmem:[#allocation8 + $0x4] sm:$0xf]
    %v282 = vld [vmem:[#allocation8 + $0x8] sm:$0xf]
    %v283 = vld [vmem:[#allocation8 + $0xc] sm:$0xf]
    %v284 = vld [vmem:[#allocation8 + $0x10] sm:$0xf]
    %v285 = vld [vmem:[#allocation8 + $0x14] sm:$0xf]
    %v286 = vld [vmem:[#allocation8 + $0x18] sm:$0xf]
    %v287 = vld [vmem:[#allocation8 + $0x1c] sm:$0xf]
    %v288 = vld [vmem:[#allocation8 + $0x20] sm:$0xf]
    %v289 = vld [vmem:[#allocation8 + $0x24] sm:$0xf]
    %v290 = vld [vmem:[#allocation8 + $0x28] sm:$0xf]
    %v291 = vld [vmem:[#allocation8 + $0x2c] sm:$0xf]
    %v292 = vld [vmem:[#allocation8 + $0x30] sm:$0xf]
    %v293 = vld [vmem:[#allocation8 + $0x34] sm:$0xf]
    %v294 = vld [vmem:[#allocation8 + $0x38] sm:$0xf]
    %v295 = vld [vmem:[#allocation8 + $0x3c] sm:$0xf]
    %v296 = vld [vmem:[%s6] sm:$0x1]
    %v298 = vlaneseq
    %v299 = vshrl.u32 %v298, 7
    %v300 = vsub.s32 0, %v299
    %v301 = vrot.slane %v296, %v300
    %v319 = vunpack.c.l.b16 %v280
    %v320 = vunpack.c.l.b16 %v281
    %v321 = vunpack.c.l.b16 %v282
    %v322 = vunpack.c.l.b16 %v283
    %v323 = vunpack.c.l.b16 %v284
    %v324 = vunpack.c.l.b16 %v285
    %v325 = vunpack.c.l.b16 %v286
    %v326 = vunpack.c.l.b16 %v287
    %v327 = vunpack.c.l.b16 %v288
    %v328 = vunpack.c.l.b16 %v289
    %v329 = vunpack.c.l.b16 %v290
    %v330 = vunpack.c.l.b16 %v291
    %v331 = vunpack.c.l.b16 %v292
    %v332 = vunpack.c.l.b16 %v293
    %v333 = vunpack.c.l.b16 %v294
    %v334 = vunpack.c.l.b16 %v295
    %v335 = vpack.c.b16 %v320, %v319
    %v336 = vpack.c.b16 %v322, %v321
    %v337 = vpack.c.b16 %v324, %v323
    %v338 = vpack.c.b16 %v326, %v325
    %v339 = vpack.c.b16 %v328, %v327
    %v340 = vpack.c.b16 %v330, %v329
    %v341 = vpack.c.b16 %v332, %v331
    %v342 = vpack.c.b16 %v334, %v333
    %351 = vmatprep.subr.bf16.mxu0 0
    %352 = vmatpush1.bf16.msra.mxu0 %v335
    %353 = vmatprep.subr.bf16.mxu0 0
    %354 = vmatpush1.bf16.msra.mxu0 %v336
    %355 = vmatprep.subr.bf16.mxu0 0
    %356 = vmatpush1.bf16.msra.mxu0 %v337
    %357 = vmatprep.subr.bf16.mxu0 0
    %358 = vmatpush1.bf16.msra.mxu0 %v338
    %359 = vmatprep.subr.bf16.mxu0 0
    %360 = vmatpush1.bf16.msra.mxu0 %v339
    %361 = vmatprep.subr.bf16.mxu0 0
    %362 = vmatpush1.bf16.msra.mxu0 %v340
    %363 = vmatprep.subr.bf16.mxu0 0
    %364 = vmatpush1.bf16.msra.mxu0 %v341
    %365 = vmatprep.subr.bf16.mxu0 0
    %366 = vmatpush1.bf16.msra.mxu0 %v342
    %367 = vmatprep.subr.bf16.mxu0 0
    %368 = vmatpush1.bf16.msra.mxu0 0
    %369 = vmatprep.subr.bf16.mxu0 0
    %370 = vmatpush1.bf16.msra.mxu0 0
    %371 = vmatprep.subr.bf16.mxu0 0
    %372 = vmatpush1.bf16.msra.mxu0 0
    %373 = vmatprep.subr.bf16.mxu0 0
    %374 = vmatpush1.bf16.msra.mxu0 0
    %375 = vmatprep.subr.bf16.mxu0 0
    %376 = vmatpush1.bf16.msra.mxu0 0
    %377 = vmatprep.subr.bf16.mxu0 0
    %378 = vmatpush1.bf16.msra.mxu0 0
    %379 = vmatprep.subr.bf16.mxu0 0
    %380 = vmatpush1.bf16.msra.mxu0 0
    %381 = vmatprep.subr.bf16.mxu0 0
    %382 = vmatpush1.bf16.msra.mxu0 0
    %383 = vmatprep.mubr.bf16.mxu0 0
    %384 = vmatmul.mubr.bf16.gmra.mrb[0].mxu0 %v279
    %v385 = vpop.f32.mrb[0].mxu0
    %v386 = vadd.f32 %v301, %v385
    %v387 = vpop.f32.mrb[0].mxu0
    %v388 = vpop.f32.mrb[0].mxu0
    %v389 = vpop.f32.mrb[0].mxu0
    %390 = vdwg.mxu0
    %391 = vst [vmem:[#allocation10] sm:$0xff] %v386
    // Predicated region
    $region46: #{tpu_custom_call.1} parent=1 // pred_check
      _
    $region47: #{tpu_custom_call.1} parent=1 // pred_check_branch
      %393 = sbr.rel (0) target = $region49
    $region48: #{tpu_custom_call.1} parent=1 // pred_region
      %s395 = ssub.s32 128, 128
      %396 = vsyncadd [#allocation4], %s395
      %s398 = sshll.u32 [#allocation10], 4
      %s399 = int_to_ptr.vmem [resolvable:$true] %s398
      %401 = dma.vmem_to_hbm [thread:$0]  %s399, 128, %s7, [#allocation4]
    $region49: #{tpu_custom_call.1} parent=1 // pred_fallthru
      _
    // Predicated region
    $region50: #{tpu_custom_call.1} parent=1 // pred_check
      _
    $region51: #{tpu_custom_call.1} parent=1 // pred_check_branch
      %403 = sbr.rel (0) target = $region53
    $region52: #{tpu_custom_call.1} parent=1 // pred_region
      %404 = dma.done [#allocation4], 128
    $region53: #{tpu_custom_call.1} parent=1 // pred_fallthru
      _
    %405 = vsyncpa [#allocation3], 1
    %406 = vsyncpa [#allocation6], 1
    %407 = vsyncpa [#allocation9], 1
    %408 = vsyncpa [#allocation4], 1

</llo_original>
